<compile_context>
chip_gen: v7x
topology: tpu7x:2x2x1
jax: 0.10.0
libtpu: 0.0.40
codegen_flags: <defaults>
</compile_context>

<pallas_src>
import jax
import jax.numpy as jnp
from jax.experimental import pallas as pl
from jax.experimental.pallas import tpu as pltpu


def _autoencoder_kernel(x_ref,
                        w1_ref, b1_ref,
                        w2_ref, b2_ref,
                        w3_ref, b3_ref,
                        w4_ref, b4_ref,
                        recon_ref, latent_ref):
    # Kernel reads x as f32 (single HBM pass) and casts on the VPU — the cast
    # is free under the huge compute slack of this tiny model.
    x = x_ref[...].astype(jnp.bfloat16)

    # ---- encoder ----
    h1 = jnp.dot(x, w1_ref[...], preferred_element_type=jnp.float32) + b1_ref[...]
    h1 = jnp.maximum(h1, 0.0).astype(jnp.bfloat16)

    z_f32 = jnp.dot(h1, w2_ref[...], preferred_element_type=jnp.float32) + b2_ref[...]
    z_f32 = jnp.maximum(z_f32, 0.0)
    z = z_f32.astype(jnp.bfloat16)

    # ---- decoder ----
    h2 = jnp.dot(z, w3_ref[...], preferred_element_type=jnp.float32) + b3_ref[...]
    h2 = jnp.maximum(h2, 0.0).astype(jnp.bfloat16)

    logits = jnp.dot(h2, w4_ref[...], preferred_element_type=jnp.float32) + b4_ref[...]
    # sigmoid(x) == 0.5 * (tanh(x/2) + 1): one EUP op, no overflow for large |x|.
    recon = 0.5 * (jnp.tanh(0.5 * logits) + 1.0)

    latent_ref[...] = z_f32.astype(latent_ref.dtype)
    recon_ref[...] = recon.astype(recon_ref.dtype)


def _round_up8(n):
    return ((n + 7) // 8) * 8


def _choose_batch_tile(batch, max_tile=4096):
    """Pick (tile, n_steps): tile is a multiple of 8 and <= max_tile, with the
    smallest number of grid steps.  Padding per step is < 8 rows by
    construction, so no full padded copy of x is ever needed for big batches."""
    b8 = _round_up8(batch)
    if b8 <= max_tile:
        return b8, 1
    n_steps = pl.cdiv(b8, max_tile)
    tile = _round_up8(pl.cdiv(batch, n_steps))
    return tile, n_steps


def prepare_params(params):
    """One-time conversion: weights -> bf16 (in, out); biases -> (1, out) f32.
    Call once outside the per-step jit so no per-call casts/reshapes remain."""
    prepared = []
    for (w, b) in params:
        prepared.append((w.astype(jnp.bfloat16),
                         b.reshape(1, -1).astype(jnp.float32)))
    return prepared


def autoencoder_forward(x, prepared_params, *, max_batch_tile=4096):
    """Fused autoencoder forward pass as a single Pallas kernel.

    x: (B, input_size) float32.
    prepared_params: output of prepare_params (bf16 weights, (1,out) f32 biases).
    Returns (reconstructed, latent) in float32 — same semantics as torch."""
    (w1b, b1r), (w2b, b2r), (w3b, b3r), (w4b, b4r) = prepared_params
    B, input_size = x.shape
    hidden = w1b.shape[1]       # 128
    latent_dim = w2b.shape[1]   # 10

    tile, n_steps = _choose_batch_tile(B, max_batch_tile)
    Bp = tile * n_steps
    x_p = x if Bp == B else jnp.pad(x, ((0, Bp - B), (0, 0)))

    def resident(arr):
        # whole-array block, same block every grid step -> stays VMEM-resident
        return pl.BlockSpec(arr.shape, lambda i: (0,) * arr.ndim)

    flops = 2 * Bp * (input_size * hidden + hidden * latent_dim
                      + latent_dim * hidden + hidden * input_size)
    weight_bytes = sum(int(w.size) * 2 + int(b.size) * 4
                       for (w, b) in prepared_params)
    bytes_accessed = (Bp * input_size * 4                      # f32 input
                      + Bp * (input_size + latent_dim) * 4     # f32 outputs
                      + weight_bytes)
    cost = pl.CostEstimate(flops=flops,
                           transcendentals=Bp * input_size,
                           bytes_accessed=bytes_accessed)

    recon, latent = pl.pallas_call(
        _autoencoder_kernel,
        out_shape=(
            jax.ShapeDtypeStruct((Bp, input_size), jnp.float32),
            jax.ShapeDtypeStruct((Bp, latent_dim), jnp.float32),
        ),
        grid_spec=pltpu.PrefetchScalarGridSpec(
            num_scalar_prefetch=0,
            grid=(n_steps,),
            in_specs=[
                pl.BlockSpec((tile, input_size), lambda i: (i, 0)),
                resident(w1b), resident(b1r),
                resident(w2b), resident(b2r),
                resident(w3b), resident(b3r),
                resident(w4b), resident(b4r),
            ],
            out_specs=[
                pl.BlockSpec((tile, input_size), lambda i: (i, 0)),
                pl.BlockSpec((tile, latent_dim), lambda i: (i, 0)),
            ],
        ),
        compiler_params=pltpu.CompilerParams(
            dimension_semantics=("parallel",)),
        cost_estimate=cost,
    )(x_p, w1b, b1r, w2b, b2r, w3b, b3r, w4b, b4r)

    if Bp != B:
        recon = recon[:B]
        latent = latent[:B]
    return recon, latent


def init_params(key, input_size, latent_dim):
    """Deterministic init mimicking torch.nn.Linear (uniform +-1/sqrt(fan_in)).
    Weights stored as (in_features, out_features)."""
    dims = [(input_size, 128), (128, latent_dim), (latent_dim, 128), (128, input_size)]
    params = []
    for (fan_in, fan_out) in dims:
        key, kw, kb = jax.random.split(key, 3)
        bound = 1.0 / jnp.sqrt(jnp.float32(fan_in))
        w = jax.random.uniform(kw, (fan_in, fan_out), jnp.float32, -bound, bound)
        b = jax.random.uniform(kb, (fan_out,), jnp.float32, -bound, bound)
        params.append((w, b))
    return params


def reference_forward(x, params):
    """Plain-JAX reference emulating the kernel's bf16 matmul operands."""
    bf = lambda a: a.astype(jnp.bfloat16)
    (w1, b1), (w2, b2), (w3, b3), (w4, b4) = params
    h1 = jnp.maximum(jnp.dot(bf(x), bf(w1), preferred_element_type=jnp.float32) + b1, 0.0)
    z = jnp.maximum(jnp.dot(bf(h1), bf(w2), preferred_element_type=jnp.float32) + b2, 0.0)
    h2 = jnp.maximum(jnp.dot(bf(z), bf(w3), preferred_element_type=jnp.float32) + b3, 0.0)
    recon = jax.nn.sigmoid(jnp.dot(bf(h2), bf(w4), preferred_element_type=jnp.float32) + b4)
    return recon, z


if __name__ == "__main__":
    input_size = 32   # stands in for X_train.shape[1]
    latent_dim = 10
    batch = 16        # small deterministic example

    key = jax.random.PRNGKey(0)
    key, kx = jax.random.split(key)
    x = jax.random.uniform(kx, (batch, input_size), jnp.float32)
    params = init_params(key, input_size, latent_dim)
    prepared = prepare_params(params)   # one-time bf16 weights / (1,out) biases

    fwd = jax.jit(autoencoder_forward)
    recon, latent = fwd(x, prepared)
    jax.block_until_ready((recon, latent))

    recon_ref, latent_ref = reference_forward(x, params)
    assert recon.shape == (batch, input_size)
    assert latent.shape == (batch, latent_dim)
    assert jnp.allclose(recon, recon_ref, atol=1e-2, rtol=1e-2)
    assert jnp.allclose(latent, latent_ref, atol=1e-2, rtol=1e-2)

    # ragged batch path: exercises round-up-to-8 padding + slice
    x_small = x[:13]
    recon_s, latent_s = jax.jit(autoencoder_forward)(x_small, prepared)
    jax.block_until_ready((recon_s, latent_s))
    recon_sr, latent_sr = reference_forward(x_small, params)
    assert recon_s.shape == (13, input_size)
    assert latent_s.shape == (13, latent_dim)
    assert jnp.allclose(recon_s, recon_sr, atol=1e-2, rtol=1e-2)
    assert jnp.allclose(latent_s, latent_sr, atol=1e-2, rtol=1e-2)

    print("KERNEL_OK")
</pallas_src>

<mosaic_0001>
module attributes {stable_mosaic.version = 11 : i64} {
  func.func @_autoencoder_kernel(%arg0: i32, %arg1: memref<16x32xf32, #tpu.memory_space<vmem>>, %arg2: memref<32x128xbf16, #tpu.memory_space<vmem>>, %arg3: memref<1x128xf32, #tpu.memory_space<vmem>>, %arg4: memref<128x10xbf16, #tpu.memory_space<vmem>>, %arg5: memref<1x10xf32, #tpu.memory_space<vmem>>, %arg6: memref<10x128xbf16, #tpu.memory_space<vmem>>, %arg7: memref<1x128xf32, #tpu.memory_space<vmem>>, %arg8: memref<128x32xbf16, #tpu.memory_space<vmem>>, %arg9: memref<1x32xf32, #tpu.memory_space<vmem>>, %arg10: memref<16x32xf32, #tpu.memory_space<vmem>>, %arg11: memref<16x10xf32, #tpu.memory_space<vmem>>) attributes {dimension_semantics = [#tpu.dimension_semantics<parallel>], iteration_bounds = array<i64: 1>, scalar_prefetch = 0 : i64, scratch_operands = 0 : i64, tpu.core_type = #tpu.core_type<tc>, window_params = [{transform_indices = @transform_0, window_bounds = array<i64: 16, 32>}, {pipeline_mode = #tpu.pipeline_mode<synchronous>, transform_indices = @transform_1, window_bounds = array<i64: 32, 128>}, {pipeline_mode = #tpu.pipeline_mode<synchronous>, transform_indices = @transform_2, window_bounds = array<i64: 1, 128>}, {pipeline_mode = #tpu.pipeline_mode<synchronous>, transform_indices = @transform_3, window_bounds = array<i64: 128, 10>}, {pipeline_mode = #tpu.pipeline_mode<synchronous>, transform_indices = @transform_4, window_bounds = array<i64: 1, 10>}, {pipeline_mode = #tpu.pipeline_mode<synchronous>, transform_indices = @transform_5, window_bounds = array<i64: 10, 128>}, {pipeline_mode = #tpu.pipeline_mode<synchronous>, transform_indices = @transform_6, window_bounds = array<i64: 1, 128>}, {pipeline_mode = #tpu.pipeline_mode<synchronous>, transform_indices = @transform_7, window_bounds = array<i64: 128, 32>}, {pipeline_mode = #tpu.pipeline_mode<synchronous>, transform_indices = @transform_8, window_bounds = array<i64: 1, 32>}, {transform_indices = @transform_9, window_bounds = array<i64: 16, 32>}, {transform_indices = @transform_10, window_bounds = array<i64: 16, 10>}]} {
    %c0 = arith.constant 0 : index
    %c0_0 = arith.constant 0 : index
    %0 = vector.load %arg1[%c0, %c0_0] : memref<16x32xf32, #tpu.memory_space<vmem>>, vector<16x32xf32>
    %1 = arith.truncf %0 : vector<16x32xf32> to vector<16x32xbf16>
    %c0_1 = arith.constant 0 : index
    %c0_2 = arith.constant 0 : index
    %2 = vector.load %arg2[%c0_1, %c0_2] : memref<32x128xbf16, #tpu.memory_space<vmem>>, vector<32x128xbf16>
    %cst = arith.constant dense<0.000000e+00> : vector<16x128xf32>
    %3 = tpu.matmul %1, %2, %cst {dimension_numbers = #tpu.dot_dimension_numbers<[1], [0], [0], [1], [0, 0, 1, 1], [], []>} : vector<16x32xbf16>, vector<32x128xbf16>, vector<16x128xf32> -> vector<16x128xf32>
    %c0_3 = arith.constant 0 : index
    %c0_4 = arith.constant 0 : index
    %4 = vector.load %arg3[%c0_3, %c0_4] : memref<1x128xf32, #tpu.memory_space<vmem>>, vector<1x128xf32>
    %5 = vector.broadcast %4 : vector<1x128xf32> to vector<16x128xf32>
    %6 = arith.addf %3, %5 : vector<16x128xf32>
    %cst_5 = arith.constant 0.000000e+00 : f32
    %7 = vector.broadcast %cst_5 : f32 to vector<16x128xf32>
    %8 = arith.maximumf %6, %7 : vector<16x128xf32>
    %9 = arith.truncf %8 : vector<16x128xf32> to vector<16x128xbf16>
    %c0_6 = arith.constant 0 : index
    %c0_7 = arith.constant 0 : index
    %10 = vector.load %arg4[%c0_6, %c0_7] : memref<128x10xbf16, #tpu.memory_space<vmem>>, vector<128x10xbf16>
    %cst_8 = arith.constant dense<0.000000e+00> : vector<16x10xf32>
    %11 = tpu.matmul %9, %10, %cst_8 {dimension_numbers = #tpu.dot_dimension_numbers<[1], [0], [0], [1], [0, 0, 1, 1], [], []>} : vector<16x128xbf16>, vector<128x10xbf16>, vector<16x10xf32> -> vector<16x10xf32>
    %c0_9 = arith.constant 0 : index
    %c0_10 = arith.constant 0 : index
    %12 = vector.load %arg5[%c0_9, %c0_10] : memref<1x10xf32, #tpu.memory_space<vmem>>, vector<1x10xf32>
    %13 = vector.broadcast %12 : vector<1x10xf32> to vector<16x10xf32>
    %14 = arith.addf %11, %13 : vector<16x10xf32>
    %cst_11 = arith.constant 0.000000e+00 : f32
    %15 = vector.broadcast %cst_11 : f32 to vector<16x10xf32>
    %16 = arith.maximumf %14, %15 : vector<16x10xf32>
    %17 = arith.truncf %16 : vector<16x10xf32> to vector<16x10xbf16>
    %c0_12 = arith.constant 0 : index
    %c0_13 = arith.constant 0 : index
    %18 = vector.load %arg6[%c0_12, %c0_13] : memref<10x128xbf16, #tpu.memory_space<vmem>>, vector<10x128xbf16>
    %cst_14 = arith.constant dense<0.000000e+00> : vector<16x128xf32>
    %19 = tpu.matmul %17, %18, %cst_14 {dimension_numbers = #tpu.dot_dimension_numbers<[1], [0], [0], [1], [0, 0, 1, 1], [], []>} : vector<16x10xbf16>, vector<10x128xbf16>, vector<16x128xf32> -> vector<16x128xf32>
    %c0_15 = arith.constant 0 : index
    %c0_16 = arith.constant 0 : index
    %20 = vector.load %arg7[%c0_15, %c0_16] : memref<1x128xf32, #tpu.memory_space<vmem>>, vector<1x128xf32>
    %21 = vector.broadcast %20 : vector<1x128xf32> to vector<16x128xf32>
    %22 = arith.addf %19, %21 : vector<16x128xf32>
    %cst_17 = arith.constant 0.000000e+00 : f32
    %23 = vector.broadcast %cst_17 : f32 to vector<16x128xf32>
    %24 = arith.maximumf %22, %23 : vector<16x128xf32>
    %25 = arith.truncf %24 : vector<16x128xf32> to vector<16x128xbf16>
    %c0_18 = arith.constant 0 : index
    %c0_19 = arith.constant 0 : index
    %26 = vector.load %arg8[%c0_18, %c0_19] : memref<128x32xbf16, #tpu.memory_space<vmem>>, vector<128x32xbf16>
    %cst_20 = arith.constant dense<0.000000e+00> : vector<16x32xf32>
    %27 = tpu.matmul %25, %26, %cst_20 {dimension_numbers = #tpu.dot_dimension_numbers<[1], [0], [0], [1], [0, 0, 1, 1], [], []>} : vector<16x128xbf16>, vector<128x32xbf16>, vector<16x32xf32> -> vector<16x32xf32>
    %c0_21 = arith.constant 0 : index
    %c0_22 = arith.constant 0 : index
    %28 = vector.load %arg9[%c0_21, %c0_22] : memref<1x32xf32, #tpu.memory_space<vmem>>, vector<1x32xf32>
    %29 = vector.broadcast %28 : vector<1x32xf32> to vector<16x32xf32>
    %30 = arith.addf %27, %29 : vector<16x32xf32>
    %cst_23 = arith.constant 5.000000e-01 : f32
    %31 = vector.broadcast %cst_23 : f32 to vector<16x32xf32>
    %32 = arith.mulf %31, %30 : vector<16x32xf32>
    %33 = math.tanh %32 : vector<16x32xf32>
    %cst_24 = arith.constant 1.000000e+00 : f32
    %34 = vector.broadcast %cst_24 : f32 to vector<16x32xf32>
    %35 = arith.addf %33, %34 : vector<16x32xf32>
    %cst_25 = arith.constant 5.000000e-01 : f32
    %36 = vector.broadcast %cst_25 : f32 to vector<16x32xf32>
    %37 = arith.mulf %36, %35 : vector<16x32xf32>
    %c0_26 = arith.constant 0 : index
    %c0_27 = arith.constant 0 : index
    %38 = vector.load %arg11[%c0_26, %c0_27] : memref<16x10xf32, #tpu.memory_space<vmem>>, vector<16x10xf32>
    tpu.vector_store %arg11[%c0_26, %c0_27], %16 {strides = array<i32>} : memref<16x10xf32, #tpu.memory_space<vmem>>, vector<16x10xf32>,
    %c0_28 = arith.constant 0 : index
    %c0_29 = arith.constant 0 : index
    %39 = vector.load %arg10[%c0_28, %c0_29] : memref<16x32xf32, #tpu.memory_space<vmem>>, vector<16x32xf32>
    tpu.vector_store %arg10[%c0_28, %c0_29], %37 {strides = array<i32>} : memref<16x32xf32, #tpu.memory_space<vmem>>, vector<16x32xf32>,
    return
  }
  func.func @transform_0(%arg0: i32) -> (i32, i32) {
    %c0_i32 = arith.constant 0 : i32
    %c0_i32_0 = arith.constant 0 : i32
    return %arg0, %c0_i32 : i32, i32
  }
  func.func @transform_1(%arg0: i32) -> (i32, i32) {
    %c0_i32 = arith.constant 0 : i32
    %c0_i32_0 = arith.constant 0 : i32
    %c0_i32_1 = arith.constant 0 : i32
    return %c0_i32, %c0_i32_0 : i32, i32
  }
  func.func @transform_2(%arg0: i32) -> (i32, i32) {
    %c0_i32 = arith.constant 0 : i32
    %c0_i32_0 = arith.constant 0 : i32
    %c0_i32_1 = arith.constant 0 : i32
    return %c0_i32, %c0_i32_0 : i32, i32
  }
  func.func @transform_3(%arg0: i32) -> (i32, i32) {
    %c0_i32 = arith.constant 0 : i32
    %c0_i32_0 = arith.constant 0 : i32
    %c0_i32_1 = arith.constant 0 : i32
    return %c0_i32, %c0_i32_0 : i32, i32
  }
  func.func @transform_4(%arg0: i32) -> (i32, i32) {
    %c0_i32 = arith.constant 0 : i32
    %c0_i32_0 = arith.constant 0 : i32
    %c0_i32_1 = arith.constant 0 : i32
    return %c0_i32, %c0_i32_0 : i32, i32
  }
  func.func @transform_5(%arg0: i32) -> (i32, i32) {
    %c0_i32 = arith.constant 0 : i32
    %c0_i32_0 = arith.constant 0 : i32
    %c0_i32_1 = arith.constant 0 : i32
    return %c0_i32, %c0_i32_0 : i32, i32
  }
  func.func @transform_6(%arg0: i32) -> (i32, i32) {
    %c0_i32 = arith.constant 0 : i32
    %c0_i32_0 = arith.constant 0 : i32
    %c0_i32_1 = arith.constant 0 : i32
    return %c0_i32, %c0_i32_0 : i32, i32
  }
  func.func @transform_7(%arg0: i32) -> (i32, i32) {
    %c0_i32 = arith.constant 0 : i32
    %c0_i32_0 = arith.constant 0 : i32
    %c0_i32_1 = arith.constant 0 : i32
    return %c0_i32, %c0_i32_0 : i32, i32
  }
  func.func @transform_8(%arg0: i32) -> (i32, i32) {
    %c0_i32 = arith.constant 0 : i32
    %c0_i32_0 = arith.constant 0 : i32
    %c0_i32_1 = arith.constant 0 : i32
    return %c0_i32, %c0_i32_0 : i32, i32
  }
  func.func @transform_9(%arg0: i32) -> (i32, i32) {
    %c0_i32 = arith.constant 0 : i32
    %c0_i32_0 = arith.constant 0 : i32
    return %arg0, %c0_i32 : i32, i32
  }
  func.func @transform_10(%arg0: i32) -> (i32, i32) {
    %c0_i32 = arith.constant 0 : i32
    %c0_i32_0 = arith.constant 0 : i32
    return %arg0, %c0_i32 : i32, i32
  }
}

</mosaic_0001>

<llo_original>
// kernel: autoencoder_forward.1
$region0: #{autoencoder_forward.1}
  #allocation0 [shape = 'u32[]', space=smem, size = 0x4, offset = 0x4, fixed_abs, tag = 'smem constant byte address 0x4 - core index']
  #allocation1 [shape = 'u32[144,128]{1,0:T(1,128)}', space=vmem, size = 0x12000, scoped, tag = 'internal scratch']
  %s0 = inlined_call_operand.vmem [shape: f32[16,32], index: 0, kind: input, shape index: {}]
  %s1 = inlined_call_operand.vmem [shape: bf16[32,128], index: 1, kind: input, shape index: {}]
  %s2 = inlined_call_operand.vmem [shape: f32[1,128], index: 2, kind: input, shape index: {}]
  %s3 = inlined_call_operand.vmem [shape: bf16[128,10], index: 3, kind: input, shape index: {}]
  %s4 = inlined_call_operand.vmem [shape: f32[1,10], index: 4, kind: input, shape index: {}]
  %s5 = inlined_call_operand.vmem [shape: bf16[10,128], index: 5, kind: input, shape index: {}]
  %s6 = inlined_call_operand.vmem [shape: f32[1,128], index: 6, kind: input, shape index: {}]
  %s7 = inlined_call_operand.vmem [shape: bf16[128,32], index: 7, kind: input, shape index: {}]
  %s8 = inlined_call_operand.vmem [shape: f32[1,32], index: 8, kind: input, shape index: {}]
  %s9 = inlined_call_operand.hbm [shape: f32[16,32], index: 9, kind: output, shape index: {0}]
  %s10 = inlined_call_operand.hbm [shape: f32[16,10], index: 10, kind: output, shape index: {1}]
  %11 = xla_tuple %s9, %s10
  %s12 = sld [smem:[#allocation0]]
  $region54: #{autoencoder_forward.1} parent=0
    _
  %s14 = ssub.s32 1, %s12
  %s15 = scalar_select 0, %s14, %s12
  $region1: #{autoencoder_forward.1} parent=0
    #allocation2 [shape = 'u8[8192]{0}', space=vmem, size = 0x2000, scoped, tag = 'output window, operand 0, single buffered']
    #allocation3 [shape = 's32[1]{0}', space=sflag, size = 0x4, scoped, tag = 'scoped memory for autoencoder_forward.1']
    #allocation4 [shape = 'u8[8192]{0}', space=vmem, size = 0x2000, scoped, tag = 'output window, operand 1, single buffered']
    #allocation5 [shape = 's32[1]{0}', space=sflag, size = 0x4, scoped, tag = 'scoped memory for autoencoder_forward.1']
    %16 = vsyncpa [#allocation3], 0
    %17 = vsyncpa [#allocation5], 0
    // Predicated region
    $region2: #{autoencoder_forward.1} parent=1 // pred_check
      _
    $region3: #{autoencoder_forward.1} parent=1 // pred_check_branch
      %19 = sbr.rel (0) target = $region5
    $region4: #{autoencoder_forward.1} parent=1 // pred_region
      _
    $region5: #{autoencoder_forward.1} parent=1 // pred_fallthru
      _
    // Predicated region
    $region6: #{autoencoder_forward.1} parent=1 // pred_check
      _
    $region7: #{autoencoder_forward.1} parent=1 // pred_check_branch
      %21 = sbr.rel (0) target = $region9
    $region8: #{autoencoder_forward.1} parent=1 // pred_region
      _
    $region9: #{autoencoder_forward.1} parent=1 // pred_fallthru
      _
    // Predicated region
    $region10: #{autoencoder_forward.1} parent=1 // pred_check
      _
    $region11: #{autoencoder_forward.1} parent=1 // pred_check_branch
      %23 = sbr.rel (0) target = $region13
    $region12: #{autoencoder_forward.1} parent=1 // pred_region
      _
    $region13: #{autoencoder_forward.1} parent=1 // pred_fallthru
      _
    // Predicated region
    $region14: #{autoencoder_forward.1} parent=1 // pred_check
      _
    $region15: #{autoencoder_forward.1} parent=1 // pred_check_branch
      %25 = sbr.rel (0) target = $region17
    $region16: #{autoencoder_forward.1} parent=1 // pred_region
      _
    $region17: #{autoencoder_forward.1} parent=1 // pred_fallthru
      _
    // Predicated region
    $region18: #{autoencoder_forward.1} parent=1 // pred_check
      _
    $region19: #{autoencoder_forward.1} parent=1 // pred_check_branch
      %27 = sbr.rel (0) target = $region21
    $region20: #{autoencoder_forward.1} parent=1 // pred_region
      _
    $region21: #{autoencoder_forward.1} parent=1 // pred_fallthru
      _
    // Predicated region
    $region22: #{autoencoder_forward.1} parent=1 // pred_check
      _
    $region23: #{autoencoder_forward.1} parent=1 // pred_check_branch
      %29 = sbr.rel (0) target = $region25
    $region24: #{autoencoder_forward.1} parent=1 // pred_region
      _
    $region25: #{autoencoder_forward.1} parent=1 // pred_fallthru
      _
    // Predicated region
    $region26: #{autoencoder_forward.1} parent=1 // pred_check
      _
    $region27: #{autoencoder_forward.1} parent=1 // pred_check_branch
      %31 = sbr.rel (0) target = $region29
    $region28: #{autoencoder_forward.1} parent=1 // pred_region
      _
    $region29: #{autoencoder_forward.1} parent=1 // pred_fallthru
      _
    // Predicated region
    $region30: #{autoencoder_forward.1} parent=1 // pred_check
      _
    $region31: #{autoencoder_forward.1} parent=1 // pred_check_branch
      %33 = sbr.rel (0) target = $region33
    $region32: #{autoencoder_forward.1} parent=1 // pred_region
      _
    $region33: #{autoencoder_forward.1} parent=1 // pred_fallthru
      _
    // Predicated region
    $region34: #{autoencoder_forward.1} parent=1 // pred_check
      _
    $region35: #{autoencoder_forward.1} parent=1 // pred_check_branch
      %35 = sbr.rel (0) target = $region37
    $region36: #{autoencoder_forward.1} parent=1 // pred_region
      _
    $region37: #{autoencoder_forward.1} parent=1 // pred_fallthru
      _
    %v37 = vld [vmem:[%s0] sm:$0xff]
    %v38 = vld [vmem:[%s0 + $0x8] sm:$0xff]
    %v39 = vpack.c.bf16 %v38, %v37
    %v40 = vld [vmem:[%s1] sm:$0xf]
    %v41 = vld [vmem:[%s1 + $0x4] sm:$0xf]
    %v42 = vld [vmem:[%s1 + $0x8] sm:$0xf]
    %v43 = vld [vmem:[%s1 + $0xc] sm:$0xf]
    %v44 = vld [vmem:[%s2] sm:$0x1]
    %v46 = vlaneseq
    %v47 = vshrl.u32 %v46, 7
    %v48 = vsub.s32 0, %v47
    %v49 = vrot.slane %v44, %v48
    %v55 = vunpack.c.l.b16 %v40
    %v56 = vunpack.c.l.b16 %v41
    %v57 = vunpack.c.l.b16 %v42
    %v58 = vunpack.c.l.b16 %v43
    %v59 = vpack.c.b16 %v56, %v55
    %v60 = vpack.c.b16 %v58, %v57
    %vm63 = vcmask 261120
    %v65 = vsel %vm63, %v39, 0
    %67 = vmatprep.subr.bf16.mxu0 0
    %68 = vmatpush1.bf16.msra.mxu0 %v59
    %69 = vmatprep.subr.bf16.mxu0 0
    %70 = vmatpush1.bf16.msra.mxu0 %v60
    %71 = vmatprep.subr.bf16.mxu0 0
    %72 = vmatpush1.bf16.msra.mxu0 0
    %73 = vmatprep.subr.bf16.mxu0 0
    %74 = vmatpush1.bf16.msra.mxu0 0
    %75 = vmatprep.subr.bf16.mxu0 0
    %76 = vmatpush1.bf16.msra.mxu0 0
    %77 = vmatprep.subr.bf16.mxu0 0
    %78 = vmatpush1.bf16.msra.mxu0 0
    %79 = vmatprep.subr.bf16.mxu0 0
    %80 = vmatpush1.bf16.msra.mxu0 0
    %81 = vmatprep.subr.bf16.mxu0 0
    %82 = vmatpush1.bf16.msra.mxu0 0
    %83 = vmatprep.subr.bf16.mxu0 0
    %84 = vmatpush1.bf16.msra.mxu0 0
    %85 = vmatprep.subr.bf16.mxu0 0
    %86 = vmatpush1.bf16.msra.mxu0 0
    %87 = vmatprep.subr.bf16.mxu0 0
    %88 = vmatpush1.bf16.msra.mxu0 0
    %89 = vmatprep.subr.bf16.mxu0 0
    %90 = vmatpush1.bf16.msra.mxu0 0
    %91 = vmatprep.subr.bf16.mxu0 0
    %92 = vmatpush1.bf16.msra.mxu0 0
    %93 = vmatprep.subr.bf16.mxu0 0
    %94 = vmatpush1.bf16.msra.mxu0 0
    %95 = vmatprep.subr.bf16.mxu0 0
    %96 = vmatpush1.bf16.msra.mxu0 0
    %97 = vmatprep.subr.bf16.mxu0 0
    %98 = vmatpush1.bf16.msra.mxu0 0
    %99 = vmatprep.mubr.bf16.mxu0 0
    %100 = vmatmul.mubr.bf16.gmra.mrb[0].mxu0 %v65
    %v101 = vpop.f32.mrb[0].mxu0
    %v102 = vadd.f32 %v49, %v101
    %v103 = vpop.f32.mrb[0].mxu0
    %v104 = vpop.f32.mrb[0].mxu0
    %v105 = vadd.f32 %v49, %v104
    %v106 = vpop.f32.mrb[0].mxu0
    %107 = vdwg.mxu0
    %v108 = vmax.f32 %v102, 0.0
    %v109 = vmax.f32 %v105, 0.0
    %v110 = vpack.c.bf16 %v109, %v108
    %v111 = vld [vmem:[%s3] sm:$0xf]
    %v112 = vld [vmem:[%s3 + $0x4] sm:$0xf]
    %v113 = vld [vmem:[%s3 + $0x8] sm:$0xf]
    %v114 = vld [vmem:[%s3 + $0xc] sm:$0xf]
    %v115 = vld [vmem:[%s3 + $0x10] sm:$0xf]
    %v116 = vld [vmem:[%s3 + $0x14] sm:$0xf]
    %v117 = vld [vmem:[%s3 + $0x18] sm:$0xf]
    %v118 = vld [vmem:[%s3 + $0x1c] sm:$0xf]
    %v119 = vld [vmem:[%s3 + $0x20] sm:$0xf]
    %v120 = vld [vmem:[%s3 + $0x24] sm:$0xf]
    %v121 = vld [vmem:[%s3 + $0x28] sm:$0xf]
    %v122 = vld [vmem:[%s3 + $0x2c] sm:$0xf]
    %v123 = vld [vmem:[%s3 + $0x30] sm:$0xf]
    %v124 = vld [vmem:[%s3 + $0x34] sm:$0xf]
    %v125 = vld [vmem:[%s3 + $0x38] sm:$0xf]
    %v126 = vld [vmem:[%s3 + $0x3c] sm:$0xf]
    %v127 = vld [vmem:[%s4] sm:$0x1]
    %v129 = vlaneseq
    %v130 = vshrl.u32 %v129, 7
    %v131 = vsub.s32 0, %v130
    %v132 = vrot.slane %v127, %v131
    %v150 = vunpack.c.l.b16 %v111
    %v151 = vunpack.c.l.b16 %v112
    %v152 = vunpack.c.l.b16 %v113
    %v153 = vunpack.c.l.b16 %v114
    %v154 = vunpack.c.l.b16 %v115
    %v155 = vunpack.c.l.b16 %v116
    %v156 = vunpack.c.l.b16 %v117
    %v157 = vunpack.c.l.b16 %v118
    %v158 = vunpack.c.l.b16 %v119
    %v159 = vunpack.c.l.b16 %v120
    %v160 = vunpack.c.l.b16 %v121
    %v161 = vunpack.c.l.b16 %v122
    %v162 = vunpack.c.l.b16 %v123
    %v163 = vunpack.c.l.b16 %v124
    %v164 = vunpack.c.l.b16 %v125
    %v165 = vunpack.c.l.b16 %v126
    %v166 = vpack.c.b16 %v151, %v150
    %v167 = vpack.c.b16 %v153, %v152
    %v168 = vpack.c.b16 %v155, %v154
    %v169 = vpack.c.b16 %v157, %v156
    %v170 = vpack.c.b16 %v159, %v158
    %v171 = vpack.c.b16 %v161, %v160
    %v172 = vpack.c.b16 %v163, %v162
    %v173 = vpack.c.b16 %v165, %v164
    %182 = vmatprep.subr.bf16.mxu0 0
    %183 = vmatpush1.bf16.msra.mxu0 %v166
    %184 = vmatprep.subr.bf16.mxu0 0
    %185 = vmatpush1.bf16.msra.mxu0 %v167
    %186 = vmatprep.subr.bf16.mxu0 0
    %187 = vmatpush1.bf16.msra.mxu0 %v168
    %188 = vmatprep.subr.bf16.mxu0 0
    %189 = vmatpush1.bf16.msra.mxu0 %v169
    %190 = vmatprep.subr.bf16.mxu0 0
    %191 = vmatpush1.bf16.msra.mxu0 %v170
    %192 = vmatprep.subr.bf16.mxu0 0
    %193 = vmatpush1.bf16.msra.mxu0 %v171
    %194 = vmatprep.subr.bf16.mxu0 0
    %195 = vmatpush1.bf16.msra.mxu0 %v172
    %196 = vmatprep.subr.bf16.mxu0 0
    %197 = vmatpush1.bf16.msra.mxu0 %v173
    %198 = vmatprep.subr.bf16.mxu0 0
    %199 = vmatpush1.bf16.msra.mxu0 0
    %200 = vmatprep.subr.bf16.mxu0 0
    %201 = vmatpush1.bf16.msra.mxu0 0
    %202 = vmatprep.subr.bf16.mxu0 0
    %203 = vmatpush1.bf16.msra.mxu0 0
    %204 = vmatprep.subr.bf16.mxu0 0
    %205 = vmatpush1.bf16.msra.mxu0 0
    %206 = vmatprep.subr.bf16.mxu0 0
    %207 = vmatpush1.bf16.msra.mxu0 0
    %208 = vmatprep.subr.bf16.mxu0 0
    %209 = vmatpush1.bf16.msra.mxu0 0
    %210 = vmatprep.subr.bf16.mxu0 0
    %211 = vmatpush1.bf16.msra.mxu0 0
    %212 = vmatprep.subr.bf16.mxu0 0
    %213 = vmatpush1.bf16.msra.mxu0 0
    %214 = vmatprep.mubr.bf16.mxu0 0
    %215 = vmatmul.mubr.bf16.gmra.mrb[0].mxu0 %v110
    %v216 = vpop.f32.mrb[0].mxu0
    %v217 = vadd.f32 %v132, %v216
    %v218 = vpop.f32.mrb[0].mxu0
    %v219 = vpop.f32.mrb[0].mxu0
    %v220 = vadd.f32 %v132, %v219
    %v221 = vpop.f32.mrb[0].mxu0
    %222 = vdwg.mxu0
    %v223 = vmax.f32 %v217, 0.0
    %v224 = vmax.f32 %v220, 0.0
    %v225 = vpack.c.bf16 %v224, %v223
    %v226 = vld [vmem:[%s5] sm:$0xf]
    %v227 = vld [vmem:[%s5 + $0x4] sm:$0x1]
    %v228 = vld [vmem:[%s6] sm:$0x1]
    %v230 = vlaneseq
    %v231 = vshrl.u32 %v230, 7
    %v232 = vsub.s32 0, %v231
    %v233 = vrot.slane %v228, %v232
    %v237 = vunpack.c.l.b16 %v226
    %v238 = vunpack.c.l.b16 %v227
    %v239 = vpack.c.b16 %v238, %v237
    %vm240 = vcmask 80896
    %v242 = vsel %vm240, %v225, 0
    %vm244 = vcmask 1044480
    %v246 = vsel %vm244, %v239, 0
    %248 = vmatprep.subr.bf16.mxu0 0
    %249 = vmatpush1.bf16.msra.mxu0 %v246
    %250 = vmatprep.subr.bf16.mxu0 0
    %251 = vmatpush1.bf16.msra.mxu0 0
    %252 = vmatprep.subr.bf16.mxu0 0
    %253 = vmatpush1.bf16.msra.mxu0 0
    %254 = vmatprep.subr.bf16.mxu0 0
    %255 = vmatpush1.bf16.msra.mxu0 0
    %256 = vmatprep.subr.bf16.mxu0 0
    %257 = vmatpush1.bf16.msra.mxu0 0
    %258 = vmatprep.subr.bf16.mxu0 0
    %259 = vmatpush1.bf16.msra.mxu0 0
    %260 = vmatprep.subr.bf16.mxu0 0
    %261 = vmatpush1.bf16.msra.mxu0 0
    %262 = vmatprep.subr.bf16.mxu0 0
    %263 = vmatpush1.bf16.msra.mxu0 0
    %264 = vmatprep.subr.bf16.mxu0 0
    %265 = vmatpush1.bf16.msra.mxu0 0
    %266 = vmatprep.subr.bf16.mxu0 0
    %267 = vmatpush1.bf16.msra.mxu0 0
    %268 = vmatprep.subr.bf16.mxu0 0
    %269 = vmatpush1.bf16.msra.mxu0 0
    %270 = vmatprep.subr.bf16.mxu0 0
    %271 = vmatpush1.bf16.msra.mxu0 0
    %272 = vmatprep.subr.bf16.mxu0 0
    %273 = vmatpush1.bf16.msra.mxu0 0
    %274 = vmatprep.subr.bf16.mxu0 0
    %275 = vmatpush1.bf16.msra.mxu0 0
    %276 = vmatprep.subr.bf16.mxu0 0
    %277 = vmatpush1.bf16.msra.mxu0 0
    %278 = vmatprep.subr.bf16.mxu0 0
    %279 = vmatpush1.bf16.msra.mxu0 0
    %280 = vmatprep.mubr.bf16.mxu0 0
    %281 = vmatmul.mubr.bf16.gmra.mrb[0].mxu0 %v242
    %v282 = vpop.f32.mrb[0].mxu0
    %v283 = vadd.f32 %v233, %v282
    %v284 = vpop.f32.mrb[0].mxu0
    %v285 = vpop.f32.mrb[0].mxu0
    %v286 = vadd.f32 %v233, %v285
    %v287 = vpop.f32.mrb[0].mxu0
    %288 = vdwg.mxu0
    %v289 = vmax.f32 %v283, 0.0
    %v290 = vmax.f32 %v286, 0.0
    %v291 = vpack.c.bf16 %v290, %v289
    %v292 = vld [vmem:[%s7] sm:$0xf]
    %v293 = vld [vmem:[%s7 + $0x4] sm:$0xf]
    %v294 = vld [vmem:[%s7 + $0x8] sm:$0xf]
    %v295 = vld [vmem:[%s7 + $0xc] sm:$0xf]
    %v296 = vld [vmem:[%s7 + $0x10] sm:$0xf]
    %v297 = vld [vmem:[%s7 + $0x14] sm:$0xf]
    %v298 = vld [vmem:[%s7 + $0x18] sm:$0xf]
    %v299 = vld [vmem:[%s7 + $0x1c] sm:$0xf]
    %v300 = vld [vmem:[%s7 + $0x20] sm:$0xf]
    %v301 = vld [vmem:[%s7 + $0x24] sm:$0xf]
    %v302 = vld [vmem:[%s7 + $0x28] sm:$0xf]
    %v303 = vld [vmem:[%s7 + $0x2c] sm:$0xf]
    %v304 = vld [vmem:[%s7 + $0x30] sm:$0xf]
    %v305 = vld [vmem:[%s7 + $0x34] sm:$0xf]
    %v306 = vld [vmem:[%s7 + $0x38] sm:$0xf]
    %v307 = vld [vmem:[%s7 + $0x3c] sm:$0xf]
    %v308 = vld [vmem:[%s8] sm:$0x1]
    %v310 = vlaneseq
    %v311 = vshrl.u32 %v310, 7
    %v312 = vsub.s32 0, %v311
    %v313 = vrot.slane %v308, %v312
    %v331 = vunpack.c.l.b16 %v292
    %v332 = vunpack.c.l.b16 %v293
    %v333 = vunpack.c.l.b16 %v294
    %v334 = vunpack.c.l.b16 %v295
    %v335 = vunpack.c.l.b16 %v296
    %v336 = vunpack.c.l.b16 %v297
    %v337 = vunpack.c.l.b16 %v298
    %v338 = vunpack.c.l.b16 %v299
    %v339 = vunpack.c.l.b16 %v300
    %v340 = vunpack.c.l.b16 %v301
    %v341 = vunpack.c.l.b16 %v302
    %v342 = vunpack.c.l.b16 %v303
    %v343 = vunpack.c.l.b16 %v304
    %v344 = vunpack.c.l.b16 %v305
    %v345 = vunpack.c.l.b16 %v306
    %v346 = vunpack.c.l.b16 %v307
    %v347 = vpack.c.b16 %v332, %v331
    %v348 = vpack.c.b16 %v334, %v333
    %v349 = vpack.c.b16 %v336, %v335
    %v350 = vpack.c.b16 %v338, %v337
    %v351 = vpack.c.b16 %v340, %v339
    %v352 = vpack.c.b16 %v342, %v341
    %v353 = vpack.c.b16 %v344, %v343
    %v354 = vpack.c.b16 %v346, %v345
    %363 = vmatprep.subr.bf16.mxu0 0
    %364 = vmatpush1.bf16.msra.mxu0 %v347
    %365 = vmatprep.subr.bf16.mxu0 0
    %366 = vmatpush1.bf16.msra.mxu0 %v348
    %367 = vmatprep.subr.bf16.mxu0 0
    %368 = vmatpush1.bf16.msra.mxu0 %v349
    %369 = vmatprep.subr.bf16.mxu0 0
    %370 = vmatpush1.bf16.msra.mxu0 %v350
    %371 = vmatprep.subr.bf16.mxu0 0
    %372 = vmatpush1.bf16.msra.mxu0 %v351
    %373 = vmatprep.subr.bf16.mxu0 0
    %374 = vmatpush1.bf16.msra.mxu0 %v352
    %375 = vmatprep.subr.bf16.mxu0 0
    %376 = vmatpush1.bf16.msra.mxu0 %v353
    %377 = vmatprep.subr.bf16.mxu0 0
    %378 = vmatpush1.bf16.msra.mxu0 %v354
    %379 = vmatprep.subr.bf16.mxu0 0
    %380 = vmatpush1.bf16.msra.mxu0 0
    %381 = vmatprep.subr.bf16.mxu0 0
    %382 = vmatpush1.bf16.msra.mxu0 0
    %383 = vmatprep.subr.bf16.mxu0 0
    %384 = vmatpush1.bf16.msra.mxu0 0
    %385 = vmatprep.subr.bf16.mxu0 0
    %386 = vmatpush1.bf16.msra.mxu0 0
    %387 = vmatprep.subr.bf16.mxu0 0
    %388 = vmatpush1.bf16.msra.mxu0 0
    %389 = vmatprep.subr.bf16.mxu0 0
    %390 = vmatpush1.bf16.msra.mxu0 0
    %391 = vmatprep.subr.bf16.mxu0 0
    %392 = vmatpush1.bf16.msra.mxu0 0
    %393 = vmatprep.subr.bf16.mxu0 0
    %394 = vmatpush1.bf16.msra.mxu0 0
    %395 = vmatprep.mubr.bf16.mxu0 0
    %396 = vmatmul.mubr.bf16.gmra.mrb[0].mxu0 %v291
    %v397 = vpop.f32.mrb[0].mxu0
    %v398 = vadd.f32 %v313, %v397
    %v399 = vpop.f32.mrb[0].mxu0
    %v400 = vpop.f32.mrb[0].mxu0
    %v401 = vadd.f32 %v313, %v400
    %v402 = vpop.f32.mrb[0].mxu0
    %403 = vdwg.mxu0
    %v404 = vmul.f32 %v398, 0.5
    %v405 = vmul.f32 %v401, 0.5
    %v406 = vtanh.pop %v404
    %v407 = vtanh.pop %v405
    %v408 = vadd.f32 %v406, 1.0
    %v409 = vadd.f32 %v407, 1.0
    %v410 = vmul.f32 %v408, 0.5
    %v411 = vmul.f32 %v409, 0.5
    %412 = vst.msk [vmem:[#allocation4] sm:$0xff] %vm240, %v223
    %413 = vst.msk [vmem:[#allocation4 + $0x8] sm:$0xff] %vm240, %v224
    %414 = vst.msk [vmem:[#allocation2] sm:$0xff] %vm63, %v410
    %415 = vst.msk [vmem:[#allocation2 + $0x8] sm:$0xff] %vm63, %v411
    // Predicated region
    $region38: #{autoencoder_forward.1} parent=1 // pred_check
      _
    $region39: #{autoencoder_forward.1} parent=1 // pred_check_branch
      %417 = sbr.rel (0) target = $region41
    $region40: #{autoencoder_forward.1} parent=1 // pred_region
      %s419 = ssub.s32 256, 256
      %420 = vsyncadd [#allocation3], %s419
      %s421 = sshll.u32 [#allocation2], 4
      %s422 = int_to_ptr.vmem [resolvable:$true] %s421
      %427 = dma.vmem_to_hbm [thread:$0]  %s422, 256, %s9, [#allocation3], 128, 128, 8
    $region41: #{autoencoder_forward.1} parent=1 // pred_fallthru
      _
    // Predicated region
    $region42: #{autoencoder_forward.1} parent=1 // pred_check
      _
    $region43: #{autoencoder_forward.1} parent=1 // pred_check_branch
      %429 = sbr.rel (0) target = $region45
    $region44: #{autoencoder_forward.1} parent=1 // pred_region
      %s431 = ssub.s32 256, 256
      %432 = vsyncadd [#allocation5], %s431
      %s433 = sshll.u32 [#allocation4], 4
      %s434 = int_to_ptr.vmem [resolvable:$true] %s433
      %439 = dma.vmem_to_hbm [thread:$0]  %s434, 256, %s10, [#allocation5], 128, 128, 8
    $region45: #{autoencoder_forward.1} parent=1 // pred_fallthru
      _
    // Predicated region
    $region46: #{autoencoder_forward.1} parent=1 // pred_check
      _
    $region47: #{autoencoder_forward.1} parent=1 // pred_check_branch
      %441 = sbr.rel (0) target = $region49
    $region48: #{autoencoder_forward.1} parent=1 // pred_region
      %442 = dma.done [#allocation3], 256
    $region49: #{autoencoder_forward.1} parent=1 // pred_fallthru
      _
    // Predicated region
    $region50: #{autoencoder_forward.1} parent=1 // pred_check
      _
    $region51: #{autoencoder_forward.1} parent=1 // pred_check_branch
      %444 = sbr.rel (0) target = $region53
    $region52: #{autoencoder_forward.1} parent=1 // pred_region
      %445 = dma.done [#allocation5], 256
    $region53: #{autoencoder_forward.1} parent=1 // pred_fallthru
      _
    %446 = vsyncpa [#allocation3], 1
    %447 = vsyncpa [#allocation5], 1

</llo_original>
